<compile_context>
chip_gen: v7x
topology: tpu7x:2x2x1
jax: 0.10.0
libtpu: 0.0.40
codegen_flags: <defaults>
</compile_context>

<pallas_src>
import jax
import jax.numpy as jnp
from jax.experimental import pallas as pl
from jax.experimental.pallas import tpu as pltpu


# ---------------------------------------------------------------------------
# Kernel: whole hot path (4 matmuls + 3 ReLUs + bias adds) fused.
# ---------------------------------------------------------------------------
def _mlp_kernel(x_ref, w1_ref, b1_ref, w2_ref, b2_ref,
                w3_ref, b3_ref, w4_ref, b4_ref, o_ref):
    # f32 -> bf16 cast of the streamed tile happens HERE (no extra HBM pass).
    h = jnp.dot(x_ref[...].astype(w1_ref.dtype), w1_ref[...],
                preferred_element_type=jnp.float32) + b1_ref[...]
    h = jnp.maximum(h, 0.0)

    h = jnp.dot(h.astype(w2_ref.dtype), w2_ref[...],
                preferred_element_type=jnp.float32) + b2_ref[...]
    h = jnp.maximum(h, 0.0)

    h = jnp.dot(h.astype(w3_ref.dtype), w3_ref[...],
                preferred_element_type=jnp.float32) + b3_ref[...]
    h = jnp.maximum(h, 0.0)

    out = jnp.dot(h.astype(w4_ref.dtype), w4_ref[...],
                  preferred_element_type=jnp.float32) + b4_ref[...]
    o_ref[...] = out.astype(o_ref.dtype)


# ---------------------------------------------------------------------------
# Wrapper: layout plumbing + pallas_call.
# ---------------------------------------------------------------------------
def _round_up(x, m):
    return (x + m - 1) // m * m


def prepare_params(params, compute_dtype=jnp.bfloat16):
    """Pad hidden dims to multiples of 128 (lane-dense matmul outputs) and cast
    weights to the MXU compute dtype. w1's fan_in keeps the true input_size and
    w4's fan_out keeps the true num_classes (narrow output). Zero padding is
    exact: padded biases are 0, ReLU(0)=0, padded weight rows/cols are 0."""
    input_size = params["w1"].shape[0]
    num_classes = params["w4"].shape[1]
    h1p = _round_up(params["w1"].shape[1], 128)
    h2p = _round_up(params["w2"].shape[1], 128)
    h3p = _round_up(params["w3"].shape[1], 128)
    in_dims = [input_size, h1p, h2p, h3p]
    out_dims = [h1p, h2p, h3p, num_classes]

    prepared = {}
    for i in range(1, 5):
        w, b = params[f"w{i}"], params[f"b{i}"]
        fi, fo = w.shape
        fi_p, fo_p = in_dims[i - 1], out_dims[i - 1]
        prepared[f"w{i}"] = jnp.pad(
            w, ((0, fi_p - fi), (0, fo_p - fo))).astype(compute_dtype)
        prepared[f"b{i}"] = jnp.pad(
            b, ((0, 0), (0, fo_p - fo))).astype(jnp.float32)
    prepared["input_size"] = input_size
    prepared["num_classes"] = num_classes
    return prepared


def simple_nn_forward(x, prepared, *, batch_tile=512, out_dtype=jnp.float32):
    """x: (B, input_size) f32.  prepared: output of prepare_params."""
    B, d_in = x.shape
    assert d_in == prepared["input_size"]
    num_classes = prepared["num_classes"]

    w1, b1 = prepared["w1"], prepared["b1"]
    w2, b2 = prepared["w2"], prepared["b2"]
    w3, b3 = prepared["w3"], prepared["b3"]
    w4, b4 = prepared["w4"], prepared["b4"]

    # Batch tile: >=2 grid steps whenever possible (v7x megacore), rounded to a
    # multiple of 16; pad B (rows only) to a multiple of the tile if needed.
    tm = min(batch_tile, max(8, _round_up(-(-B // 2), 16)))
    b_pad = _round_up(B, tm)
    x_in = x if b_pad == B else jnp.pad(x, ((0, b_pad - B), (0, 0)))

    grid = (b_pad // tm,)

    def resident(arr):  # tiny, VMEM-resident across all grid steps
        return pl.BlockSpec(arr.shape, lambda i: (0, 0))

    flops = 2 * b_pad * sum(
        prepared[f"w{i}"].shape[0] * prepared[f"w{i}"].shape[1]
        for i in range(1, 5))
    bytes_accessed = (
        x_in.size * x_in.dtype.itemsize
        + b_pad * num_classes * jnp.dtype(out_dtype).itemsize
        + sum(prepared[f"w{i}"].size * prepared[f"w{i}"].dtype.itemsize
              + prepared[f"b{i}"].size * 4 for i in range(1, 5)))

    out = pl.pallas_call(
        _mlp_kernel,
        out_shape=jax.ShapeDtypeStruct((b_pad, num_classes), out_dtype),
        grid_spec=pl.GridSpec(
            grid=grid,
            in_specs=[
                # streamed f32 x tile at its true feature width (== full dim)
                pl.BlockSpec((tm, d_in), lambda i: (i, 0)),
                resident(w1), resident(b1),
                resident(w2), resident(b2),
                resident(w3), resident(b3),
                resident(w4), resident(b4),
            ],
            # narrow output: last block dim == full array dim (num_classes)
            out_specs=pl.BlockSpec((tm, num_classes), lambda i: (i, 0)),
        ),
        compiler_params=pltpu.CompilerParams(
            dimension_semantics=("parallel",)),
        cost_estimate=pl.CostEstimate(
            flops=flops, transcendentals=0, bytes_accessed=bytes_accessed),
    )(x_in, w1, b1, w2, b2, w3, b3, w4, b4)

    return out if b_pad == B else out[:B]


# ---------------------------------------------------------------------------
# Param init mimicking nn.Linear's U(-1/sqrt(fan_in), 1/sqrt(fan_in)).
# Weights stored pre-transposed to (in_features, out_features).
# ---------------------------------------------------------------------------
def init_params(key, input_size, h1, h2, h3, num_classes, dtype=jnp.float32):
    sizes = [(input_size, h1), (h1, h2), (h2, h3), (h3, num_classes)]
    params = {}
    for idx, (fan_in, fan_out) in enumerate(sizes, start=1):
        key, kw, kb = jax.random.split(key, 3)
        bound = 1.0 / jnp.sqrt(jnp.asarray(fan_in, jnp.float32))
        params[f"w{idx}"] = jax.random.uniform(
            kw, (fan_in, fan_out), dtype, minval=-bound, maxval=bound)
        params[f"b{idx}"] = jax.random.uniform(
            kb, (1, fan_out), dtype, minval=-bound, maxval=bound)
    return params


if __name__ == "__main__":
    input_size, h1, h2, h3, num_classes = 32, 64, 64, 32, 16
    batch = 256  # tm=128 -> 2 grid steps, no row padding

    key = jax.random.PRNGKey(0)
    key, kx = jax.random.split(key)
    x = jax.random.normal(kx, (batch, input_size), jnp.float32)
    params = init_params(key, input_size, h1, h2, h3, num_classes)

    prepared = prepare_params(params, compute_dtype=jnp.bfloat16)
    out = simple_nn_forward(x, prepared, batch_tile=512)
    out = jax.block_until_ready(out)
    assert out.shape == (batch, num_classes)
    assert out.dtype == jnp.float32

    # Reference matching the kernel's bf16-matmul / f32-accumulate numerics.
    def ref_matched(x, params):
        h = x
        for i in range(1, 5):
            w = params[f"w{i}"].astype(jnp.bfloat16)
            h = jnp.dot(h.astype(jnp.bfloat16), w,
                        preferred_element_type=jnp.float32) + params[f"b{i}"]
            if i < 4:
                h = jnp.maximum(h, 0.0)
        return h

    # Full-f32 reference (exact PyTorch semantics), checked loosely since the
    # kernel intentionally uses bf16 MXU inputs.
    def ref_f32(x, params):
        h = x
        for i in range(1, 5):
            h = h @ params[f"w{i}"] + params[f"b{i}"]
            if i < 4:
                h = jnp.maximum(h, 0.0)
        return h

    assert jnp.allclose(out, ref_matched(x, params), atol=2e-3, rtol=2e-3)
    assert jnp.allclose(out, ref_f32(x, params), atol=1e-1, rtol=1e-1)

    print("KERNEL_OK")
</pallas_src>

<mosaic_0001>
module attributes {stable_mosaic.version = 11 : i64} {
  func.func @_mlp_kernel(%arg0: i32, %arg1: memref<128x32xf32, #tpu.memory_space<vmem>>, %arg2: memref<32x128xbf16, #tpu.memory_space<vmem>>, %arg3: memref<1x128xf32, #tpu.memory_space<vmem>>, %arg4: memref<128x128xbf16, #tpu.memory_space<vmem>>, %arg5: memref<1x128xf32, #tpu.memory_space<vmem>>, %arg6: memref<128x128xbf16, #tpu.memory_space<vmem>>, %arg7: memref<1x128xf32, #tpu.memory_space<vmem>>, %arg8: memref<128x16xbf16, #tpu.memory_space<vmem>>, %arg9: memref<1x16xf32, #tpu.memory_space<vmem>>, %arg10: memref<128x16xf32, #tpu.memory_space<vmem>>) attributes {dimension_semantics = [#tpu.dimension_semantics<parallel>], iteration_bounds = array<i64: 2>, scalar_prefetch = 0 : i64, scratch_operands = 0 : i64, tpu.core_type = #tpu.core_type<tc>, window_params = [{transform_indices = @transform_0, window_bounds = array<i64: 128, 32>}, {pipeline_mode = #tpu.pipeline_mode<synchronous>, transform_indices = @transform_1, window_bounds = array<i64: 32, 128>}, {pipeline_mode = #tpu.pipeline_mode<synchronous>, transform_indices = @transform_2, window_bounds = array<i64: 1, 128>}, {pipeline_mode = #tpu.pipeline_mode<synchronous>, transform_indices = @transform_3, window_bounds = array<i64: 128, 128>}, {pipeline_mode = #tpu.pipeline_mode<synchronous>, transform_indices = @transform_4, window_bounds = array<i64: 1, 128>}, {pipeline_mode = #tpu.pipeline_mode<synchronous>, transform_indices = @transform_5, window_bounds = array<i64: 128, 128>}, {pipeline_mode = #tpu.pipeline_mode<synchronous>, transform_indices = @transform_6, window_bounds = array<i64: 1, 128>}, {pipeline_mode = #tpu.pipeline_mode<synchronous>, transform_indices = @transform_7, window_bounds = array<i64: 128, 16>}, {pipeline_mode = #tpu.pipeline_mode<synchronous>, transform_indices = @transform_8, window_bounds = array<i64: 1, 16>}, {transform_indices = @transform_9, window_bounds = array<i64: 128, 16>}]} {
    %c0 = arith.constant 0 : index
    %c0_0 = arith.constant 0 : index
    %0 = vector.load %arg1[%c0, %c0_0] : memref<128x32xf32, #tpu.memory_space<vmem>>, vector<128x32xf32>
    %1 = arith.truncf %0 : vector<128x32xf32> to vector<128x32xbf16>
    %c0_1 = arith.constant 0 : index
    %c0_2 = arith.constant 0 : index
    %2 = vector.load %arg2[%c0_1, %c0_2] : memref<32x128xbf16, #tpu.memory_space<vmem>>, vector<32x128xbf16>
    %cst = arith.constant dense<0.000000e+00> : vector<128x128xf32>
    %3 = tpu.matmul %1, %2, %cst {dimension_numbers = #tpu.dot_dimension_numbers<[1], [0], [0], [1], [0, 0, 1, 1], [], []>} : vector<128x32xbf16>, vector<32x128xbf16>, vector<128x128xf32> -> vector<128x128xf32>
    %c0_3 = arith.constant 0 : index
    %c0_4 = arith.constant 0 : index
    %4 = vector.load %arg3[%c0_3, %c0_4] : memref<1x128xf32, #tpu.memory_space<vmem>>, vector<1x128xf32>
    %5 = vector.broadcast %4 : vector<1x128xf32> to vector<128x128xf32>
    %6 = arith.addf %3, %5 : vector<128x128xf32>
    %cst_5 = arith.constant 0.000000e+00 : f32
    %7 = vector.broadcast %cst_5 : f32 to vector<128x128xf32>
    %8 = arith.maximumf %6, %7 : vector<128x128xf32>
    %9 = arith.truncf %8 : vector<128x128xf32> to vector<128x128xbf16>
    %c0_6 = arith.constant 0 : index
    %c0_7 = arith.constant 0 : index
    %10 = vector.load %arg4[%c0_6, %c0_7] : memref<128x128xbf16, #tpu.memory_space<vmem>>, vector<128x128xbf16>
    %cst_8 = arith.constant dense<0.000000e+00> : vector<128x128xf32>
    %11 = tpu.matmul %9, %10, %cst_8 {dimension_numbers = #tpu.dot_dimension_numbers<[1], [0], [0], [1], [0, 0, 1, 1], [], []>} : vector<128x128xbf16>, vector<128x128xbf16>, vector<128x128xf32> -> vector<128x128xf32>
    %c0_9 = arith.constant 0 : index
    %c0_10 = arith.constant 0 : index
    %12 = vector.load %arg5[%c0_9, %c0_10] : memref<1x128xf32, #tpu.memory_space<vmem>>, vector<1x128xf32>
    %13 = vector.broadcast %12 : vector<1x128xf32> to vector<128x128xf32>
    %14 = arith.addf %11, %13 : vector<128x128xf32>
    %cst_11 = arith.constant 0.000000e+00 : f32
    %15 = vector.broadcast %cst_11 : f32 to vector<128x128xf32>
    %16 = arith.maximumf %14, %15 : vector<128x128xf32>
    %17 = arith.truncf %16 : vector<128x128xf32> to vector<128x128xbf16>
    %c0_12 = arith.constant 0 : index
    %c0_13 = arith.constant 0 : index
    %18 = vector.load %arg6[%c0_12, %c0_13] : memref<128x128xbf16, #tpu.memory_space<vmem>>, vector<128x128xbf16>
    %cst_14 = arith.constant dense<0.000000e+00> : vector<128x128xf32>
    %19 = tpu.matmul %17, %18, %cst_14 {dimension_numbers = #tpu.dot_dimension_numbers<[1], [0], [0], [1], [0, 0, 1, 1], [], []>} : vector<128x128xbf16>, vector<128x128xbf16>, vector<128x128xf32> -> vector<128x128xf32>
    %c0_15 = arith.constant 0 : index
    %c0_16 = arith.constant 0 : index
    %20 = vector.load %arg7[%c0_15, %c0_16] : memref<1x128xf32, #tpu.memory_space<vmem>>, vector<1x128xf32>
    %21 = vector.broadcast %20 : vector<1x128xf32> to vector<128x128xf32>
    %22 = arith.addf %19, %21 : vector<128x128xf32>
    %cst_17 = arith.constant 0.000000e+00 : f32
    %23 = vector.broadcast %cst_17 : f32 to vector<128x128xf32>
    %24 = arith.maximumf %22, %23 : vector<128x128xf32>
    %25 = arith.truncf %24 : vector<128x128xf32> to vector<128x128xbf16>
    %c0_18 = arith.constant 0 : index
    %c0_19 = arith.constant 0 : index
    %26 = vector.load %arg8[%c0_18, %c0_19] : memref<128x16xbf16, #tpu.memory_space<vmem>>, vector<128x16xbf16>
    %cst_20 = arith.constant dense<0.000000e+00> : vector<128x16xf32>
    %27 = tpu.matmul %25, %26, %cst_20 {dimension_numbers = #tpu.dot_dimension_numbers<[1], [0], [0], [1], [0, 0, 1, 1], [], []>} : vector<128x128xbf16>, vector<128x16xbf16>, vector<128x16xf32> -> vector<128x16xf32>
    %c0_21 = arith.constant 0 : index
    %c0_22 = arith.constant 0 : index
    %28 = vector.load %arg9[%c0_21, %c0_22] : memref<1x16xf32, #tpu.memory_space<vmem>>, vector<1x16xf32>
    %29 = vector.broadcast %28 : vector<1x16xf32> to vector<128x16xf32>
    %30 = arith.addf %27, %29 : vector<128x16xf32>
    %c0_23 = arith.constant 0 : index
    %c0_24 = arith.constant 0 : index
    %31 = vector.load %arg10[%c0_23, %c0_24] : memref<128x16xf32, #tpu.memory_space<vmem>>, vector<128x16xf32>
    tpu.vector_store %arg10[%c0_23, %c0_24], %30 {strides = array<i32>} : memref<128x16xf32, #tpu.memory_space<vmem>>, vector<128x16xf32>,
    return
  }
  func.func @transform_0(%arg0: i32) -> (i32, i32) {
    %c0_i32 = arith.constant 0 : i32
    %c0_i32_0 = arith.constant 0 : i32
    return %arg0, %c0_i32 : i32, i32
  }
  func.func @transform_1(%arg0: i32) -> (i32, i32) {
    %c0_i32 = arith.constant 0 : i32
    %c0_i32_0 = arith.constant 0 : i32
    %c0_i32_1 = arith.constant 0 : i32
    return %c0_i32, %c0_i32_0 : i32, i32
  }
  func.func @transform_2(%arg0: i32) -> (i32, i32) {
    %c0_i32 = arith.constant 0 : i32
    %c0_i32_0 = arith.constant 0 : i32
    %c0_i32_1 = arith.constant 0 : i32
    return %c0_i32, %c0_i32_0 : i32, i32
  }
  func.func @transform_3(%arg0: i32) -> (i32, i32) {
    %c0_i32 = arith.constant 0 : i32
    %c0_i32_0 = arith.constant 0 : i32
    %c0_i32_1 = arith.constant 0 : i32
    return %c0_i32, %c0_i32_0 : i32, i32
  }
  func.func @transform_4(%arg0: i32) -> (i32, i32) {
    %c0_i32 = arith.constant 0 : i32
    %c0_i32_0 = arith.constant 0 : i32
    %c0_i32_1 = arith.constant 0 : i32
    return %c0_i32, %c0_i32_0 : i32, i32
  }
  func.func @transform_5(%arg0: i32) -> (i32, i32) {
    %c0_i32 = arith.constant 0 : i32
    %c0_i32_0 = arith.constant 0 : i32
    %c0_i32_1 = arith.constant 0 : i32
    return %c0_i32, %c0_i32_0 : i32, i32
  }
  func.func @transform_6(%arg0: i32) -> (i32, i32) {
    %c0_i32 = arith.constant 0 : i32
    %c0_i32_0 = arith.constant 0 : i32
    %c0_i32_1 = arith.constant 0 : i32
    return %c0_i32, %c0_i32_0 : i32, i32
  }
  func.func @transform_7(%arg0: i32) -> (i32, i32) {
    %c0_i32 = arith.constant 0 : i32
    %c0_i32_0 = arith.constant 0 : i32
    %c0_i32_1 = arith.constant 0 : i32
    return %c0_i32, %c0_i32_0 : i32, i32
  }
  func.func @transform_8(%arg0: i32) -> (i32, i32) {
    %c0_i32 = arith.constant 0 : i32
    %c0_i32_0 = arith.constant 0 : i32
    %c0_i32_1 = arith.constant 0 : i32
    return %c0_i32, %c0_i32_0 : i32, i32
  }
  func.func @transform_9(%arg0: i32) -> (i32, i32) {
    %c0_i32 = arith.constant 0 : i32
    %c0_i32_0 = arith.constant 0 : i32
    return %arg0, %c0_i32 : i32, i32
  }
}

</mosaic_0001>

<llo_original>
// kernel: tpu_custom_call.1
$region0: #{tpu_custom_call.1}
  #allocation0 [shape = 'u32[]', space=smem, size = 0x4, offset = 0x4, fixed_abs, tag = 'smem constant byte address 0x4 - core index']
  #allocation1 [shape = 'u32[144,128]{1,0:T(1,128)}', space=vmem, size = 0x12000, scoped, tag = 'internal scratch']
  %s0 = inlined_call_operand.vmem [shape: f32[256,32], index: 0, kind: input, shape index: {}]
  %s1 = inlined_call_operand.vmem [shape: bf16[32,128], index: 1, kind: input, shape index: {}]
  %s2 = inlined_call_operand.vmem [shape: f32[1,128], index: 2, kind: input, shape index: {}]
  %s3 = inlined_call_operand.vmem [shape: bf16[128,128], index: 3, kind: input, shape index: {}]
  %s4 = inlined_call_operand.vmem [shape: f32[1,128], index: 4, kind: input, shape index: {}]
  %s5 = inlined_call_operand.vmem [shape: bf16[128,128], index: 5, kind: input, shape index: {}]
  %s6 = inlined_call_operand.vmem [shape: f32[1,128], index: 6, kind: input, shape index: {}]
  %s7 = inlined_call_operand.vmem [shape: bf16[128,16], index: 7, kind: input, shape index: {}]
  %s8 = inlined_call_operand.vmem [shape: f32[1,16], index: 8, kind: input, shape index: {}]
  %s9 = inlined_call_operand.vmem [shape: f32[256,16], index: 9, kind: output, shape index: {}]
  %s10 = sld [smem:[#allocation0]]
  $region69: #{tpu_custom_call.1} parent=0
    _
  %s12 = ssub.s32 1, %s10
  %s13 = scalar_select 0, %s12, %s10
  loop: start=0, step=1, limit=4
  $region2: #{tpu_custom_call.1} parent=0 // loop_pre_header
    _
  $region3: #{tpu_custom_call.1} parent=0 // loop_header
    %s15 = sphi 0, %s19
    %p16 = scmp.ge.s32.totalorder %s15, 4
    %s25 = sphi 0, %s27
    %s28 = sphi 0, %s25
    %s29 = sphi 0, %s28
    %s45 = sphi 0, %s29
    %s49 = sphi 0, %s49
    %s51 = sphi 0, %s49
    %s52 = sphi 0, %s51
    %s66 = sphi 0, %s52
    %s70 = sphi 0, %s70
    %s72 = sphi 0, %s70
    %s73 = sphi 0, %s72
    %s87 = sphi 0, %s73
    %s91 = sphi 0, %s91
    %s93 = sphi 0, %s91
    %s94 = sphi 0, %s93
    %s108 = sphi 0, %s94
    %s112 = sphi 0, %s112
    %s114 = sphi 0, %s112
    %s115 = sphi 0, %s114
    %s129 = sphi 0, %s115
    %s133 = sphi 0, %s133
    %s135 = sphi 0, %s133
    %s136 = sphi 0, %s135
    %s150 = sphi 0, %s136
    %s154 = sphi 0, %s154
    %s156 = sphi 0, %s154
    %s157 = sphi 0, %s156
    %s171 = sphi 0, %s157
    %s175 = sphi 0, %s175
    %s177 = sphi 0, %s175
    %s178 = sphi 0, %s177
    %s192 = sphi 0, %s178
    %s196 = sphi 0, %s196
    %s198 = sphi 0, %s196
    %s199 = sphi 0, %s198
    %s213 = sphi 0, %s199
    %s219 = sphi 0, %s221
    %s222 = sphi 0, %s219
    %s223 = sphi 0, %s222
    %s239 = sphi 0, %s223
  $region4: #{tpu_custom_call.1} parent=0 // loop_header_branch
    %18 = sbr.rel (%p16) target = $region8
  $region5: #{tpu_custom_call.1} parent=0 // loop_body
    %s20 = ssub.s32 %s15, 1
    %s21 = ssub.s32 %s15, 2
    %s22 = sadd.s32 %s15, 1
    %s23 = ssub.s32 %s15, %s22
    %p24 = scmp.eq.s32.totalorder %s23, 0
    %s26 = sadd.s32 %s25, 1
    %s27 = scalar_select %p24, %s25, %s26
    %p30 = pneg %p24
    %p31 = scmp.eq.s32.totalorder %s15, 1
    %p32 = por %p30, %p31
    %p33 = scmp.ne.s32.totalorder %s25, %s28
    %p34 = scmp.eq.s32.totalorder %s15, 0
    %p35 = por %p33, %p34
    %p36 = scmp.ne.s32.totalorder %s25, %s28
    %p37 = scmp.eq.s32.totalorder %s20, 1
    %p38 = por %p36, %p37
    %p39 = scmp.ne.s32.totalorder %s28, %s29
    %p40 = scmp.eq.s32.totalorder %s20, 0
    %p41 = por %p39, %p40
    %p42 = scmp.ne.s32.totalorder %s28, %s29
    %p43 = scmp.eq.s32.totalorder %s21, 1
    %p44 = por %p42, %p43
    %p46 = scmp.ne.s32.totalorder %s29, %s45
    %p47 = scmp.eq.s32.totalorder %s21, 0
    %p48 = por %p46, %p47
    %s50 = sadd.s32 %s49, 1
    %p53 = scmp.eq.s32.totalorder %s15, 1
    %p54 = scmp.ne.s32.totalorder %s49, %s51
    %p55 = scmp.eq.s32.totalorder %s15, 0
    %p56 = por %p54, %p55
    %p57 = scmp.ne.s32.totalorder %s49, %s51
    %p58 = scmp.eq.s32.totalorder %s20, 1
    %p59 = por %p57, %p58
    %p60 = scmp.ne.s32.totalorder %s51, %s52
    %p61 = scmp.eq.s32.totalorder %s20, 0
    %p62 = por %p60, %p61
    %p63 = scmp.ne.s32.totalorder %s51, %s52
    %p64 = scmp.eq.s32.totalorder %s21, 1
    %p65 = por %p63, %p64
    %p67 = scmp.ne.s32.totalorder %s52, %s66
    %p68 = scmp.eq.s32.totalorder %s21, 0
    %p69 = por %p67, %p68
    %s71 = sadd.s32 %s70, 1
    %p74 = scmp.eq.s32.totalorder %s15, 1
    %p75 = scmp.ne.s32.totalorder %s70, %s72
    %p76 = scmp.eq.s32.totalorder %s15, 0
    %p77 = por %p75, %p76
    %p78 = scmp.ne.s32.totalorder %s70, %s72
    %p79 = scmp.eq.s32.totalorder %s20, 1
    %p80 = por %p78, %p79
    %p81 = scmp.ne.s32.totalorder %s72, %s73
    %p82 = scmp.eq.s32.totalorder %s20, 0
    %p83 = por %p81, %p82
    %p84 = scmp.ne.s32.totalorder %s72, %s73
    %p85 = scmp.eq.s32.totalorder %s21, 1
    %p86 = por %p84, %p85
    %p88 = scmp.ne.s32.totalorder %s73, %s87
    %p89 = scmp.eq.s32.totalorder %s21, 0
    %p90 = por %p88, %p89
    %s92 = sadd.s32 %s91, 1
    %p95 = scmp.eq.s32.totalorder %s15, 1
    %p96 = scmp.ne.s32.totalorder %s91, %s93
    %p97 = scmp.eq.s32.totalorder %s15, 0
    %p98 = por %p96, %p97
    %p99 = scmp.ne.s32.totalorder %s91, %s93
    %p100 = scmp.eq.s32.totalorder %s20, 1
    %p101 = por %p99, %p100
    %p102 = scmp.ne.s32.totalorder %s93, %s94
    %p103 = scmp.eq.s32.totalorder %s20, 0
    %p104 = por %p102, %p103
    %p105 = scmp.ne.s32.totalorder %s93, %s94
    %p106 = scmp.eq.s32.totalorder %s21, 1
    %p107 = por %p105, %p106
    %p109 = scmp.ne.s32.totalorder %s94, %s108
    %p110 = scmp.eq.s32.totalorder %s21, 0
    %p111 = por %p109, %p110
    %s113 = sadd.s32 %s112, 1
    %p116 = scmp.eq.s32.totalorder %s15, 1
    %p117 = scmp.ne.s32.totalorder %s112, %s114
    %p118 = scmp.eq.s32.totalorder %s15, 0
    %p119 = por %p117, %p118
    %p120 = scmp.ne.s32.totalorder %s112, %s114
    %p121 = scmp.eq.s32.totalorder %s20, 1
    %p122 = por %p120, %p121
    %p123 = scmp.ne.s32.totalorder %s114, %s115
    %p124 = scmp.eq.s32.totalorder %s20, 0
    %p125 = por %p123, %p124
    %p126 = scmp.ne.s32.totalorder %s114, %s115
    %p127 = scmp.eq.s32.totalorder %s21, 1
    %p128 = por %p126, %p127
    %p130 = scmp.ne.s32.totalorder %s115, %s129
    %p131 = scmp.eq.s32.totalorder %s21, 0
    %p132 = por %p130, %p131
    %s134 = sadd.s32 %s133, 1
    %p137 = scmp.eq.s32.totalorder %s15, 1
    %p138 = scmp.ne.s32.totalorder %s133, %s135
    %p139 = scmp.eq.s32.totalorder %s15, 0
    %p140 = por %p138, %p139
    %p141 = scmp.ne.s32.totalorder %s133, %s135
    %p142 = scmp.eq.s32.totalorder %s20, 1
    %p143 = por %p141, %p142
    %p144 = scmp.ne.s32.totalorder %s135, %s136
    %p145 = scmp.eq.s32.totalorder %s20, 0
    %p146 = por %p144, %p145
    %p147 = scmp.ne.s32.totalorder %s135, %s136
    %p148 = scmp.eq.s32.totalorder %s21, 1
    %p149 = por %p147, %p148
    %p151 = scmp.ne.s32.totalorder %s136, %s150
    %p152 = scmp.eq.s32.totalorder %s21, 0
    %p153 = por %p151, %p152
    %s155 = sadd.s32 %s154, 1
    %p158 = scmp.eq.s32.totalorder %s15, 1
    %p159 = scmp.ne.s32.totalorder %s154, %s156
    %p160 = scmp.eq.s32.totalorder %s15, 0
    %p161 = por %p159, %p160
    %p162 = scmp.ne.s32.totalorder %s154, %s156
    %p163 = scmp.eq.s32.totalorder %s20, 1
    %p164 = por %p162, %p163
    %p165 = scmp.ne.s32.totalorder %s156, %s157
    %p166 = scmp.eq.s32.totalorder %s20, 0
    %p167 = por %p165, %p166
    %p168 = scmp.ne.s32.totalorder %s156, %s157
    %p169 = scmp.eq.s32.totalorder %s21, 1
    %p170 = por %p168, %p169
    %p172 = scmp.ne.s32.totalorder %s157, %s171
    %p173 = scmp.eq.s32.totalorder %s21, 0
    %p174 = por %p172, %p173
    %s176 = sadd.s32 %s175, 1
    %p179 = scmp.eq.s32.totalorder %s15, 1
    %p180 = scmp.ne.s32.totalorder %s175, %s177
    %p181 = scmp.eq.s32.totalorder %s15, 0
    %p182 = por %p180, %p181
    %p183 = scmp.ne.s32.totalorder %s175, %s177
    %p184 = scmp.eq.s32.totalorder %s20, 1
    %p185 = por %p183, %p184
    %p186 = scmp.ne.s32.totalorder %s177, %s178
    %p187 = scmp.eq.s32.totalorder %s20, 0
    %p188 = por %p186, %p187
    %p189 = scmp.ne.s32.totalorder %s177, %s178
    %p190 = scmp.eq.s32.totalorder %s21, 1
    %p191 = por %p189, %p190
    %p193 = scmp.ne.s32.totalorder %s178, %s192
    %p194 = scmp.eq.s32.totalorder %s21, 0
    %p195 = por %p193, %p194
    %s197 = sadd.s32 %s196, 1
    %p200 = scmp.eq.s32.totalorder %s15, 1
    %p201 = scmp.ne.s32.totalorder %s196, %s198
    %p202 = scmp.eq.s32.totalorder %s15, 0
    %p203 = por %p201, %p202
    %p204 = scmp.ne.s32.totalorder %s196, %s198
    %p205 = scmp.eq.s32.totalorder %s20, 1
    %p206 = por %p204, %p205
    %p207 = scmp.ne.s32.totalorder %s198, %s199
    %p208 = scmp.eq.s32.totalorder %s20, 0
    %p209 = por %p207, %p208
    %p210 = scmp.ne.s32.totalorder %s198, %s199
    %p211 = scmp.eq.s32.totalorder %s21, 1
    %p212 = por %p210, %p211
    %p214 = scmp.ne.s32.totalorder %s199, %s213
    %p215 = scmp.eq.s32.totalorder %s21, 0
    %p216 = por %p214, %p215
    %s217 = ssub.s32 %s15, %s22
    %p218 = scmp.eq.s32.totalorder %s217, 0
    %s220 = sadd.s32 %s219, 1
    %s221 = scalar_select %p218, %s219, %s220
    %p224 = pneg %p218
    %p225 = scmp.eq.s32.totalorder %s15, 1
    %p226 = por %p224, %p225
    %p227 = scmp.ne.s32.totalorder %s219, %s222
    %p228 = scmp.eq.s32.totalorder %s15, 0
    %p229 = por %p227, %p228
    %p230 = scmp.ne.s32.totalorder %s219, %s222
    %p231 = scmp.eq.s32.totalorder %s20, 1
    %p232 = por %p230, %p231
    %p233 = scmp.ne.s32.totalorder %s222, %s223
    %p234 = scmp.eq.s32.totalorder %s20, 0
    %p235 = por %p233, %p234
    %p236 = scmp.ne.s32.totalorder %s222, %s223
    %p237 = scmp.eq.s32.totalorder %s21, 1
    %p238 = por %p236, %p237
    %p240 = scmp.ne.s32.totalorder %s223, %s239
    %p241 = scmp.eq.s32.totalorder %s21, 0
    %p242 = por %p240, %p241
    %p243 = scmp.le.s32.totalorder 1, %s15
    %p244 = scmp.lt.s32.totalorder %s15, 3
    %p245 = pnand %p243, %p244
    %p246 = pneg %p245
    // Predicated region
    $region9: #{tpu_custom_call.1} parent=5 // pred_check
      _
    $region10: #{tpu_custom_call.1} parent=5 // pred_check_branch
      %248 = sbr.rel (%p245) target = $region12
    $region11: #{tpu_custom_call.1} parent=5 // pred_region
      %s249 = ssub.s32 %s15, 1
      // Predicated region
      $region13: #{tpu_custom_call.1} parent=11 // pred_check
        %p250 = pneg %p62
      $region14: #{tpu_custom_call.1} parent=11 // pred_check_branch
        %252 = sbr.rel (%p250) target = $region16
      $region15: #{tpu_custom_call.1} parent=11 // pred_region
        _
      $region16: #{tpu_custom_call.1} parent=11 // pred_fallthru
        _
      // Predicated region
      $region17: #{tpu_custom_call.1} parent=11 // pred_check
        %p253 = pneg %p83
      $region18: #{tpu_custom_call.1} parent=11 // pred_check_branch
        %255 = sbr.rel (%p253) target = $region20
      $region19: #{tpu_custom_call.1} parent=11 // pred_region
        _
      $region20: #{tpu_custom_call.1} parent=11 // pred_fallthru
        _
      // Predicated region
      $region21: #{tpu_custom_call.1} parent=11 // pred_check
        %p256 = pneg %p104
      $region22: #{tpu_custom_call.1} parent=11 // pred_check_branch
        %258 = sbr.rel (%p256) target = $region24
      $region23: #{tpu_custom_call.1} parent=11 // pred_region
        _
      $region24: #{tpu_custom_call.1} parent=11 // pred_fallthru
        _
      // Predicated region
      $region25: #{tpu_custom_call.1} parent=11 // pred_check
        %p259 = pneg %p125
      $region26: #{tpu_custom_call.1} parent=11 // pred_check_branch
        %261 = sbr.rel (%p259) target = $region28
      $region27: #{tpu_custom_call.1} parent=11 // pred_region
        _
      $region28: #{tpu_custom_call.1} parent=11 // pred_fallthru
        _
      // Predicated region
      $region29: #{tpu_custom_call.1} parent=11 // pred_check
        %p262 = pneg %p146
      $region30: #{tpu_custom_call.1} parent=11 // pred_check_branch
        %264 = sbr.rel (%p262) target = $region32
      $region31: #{tpu_custom_call.1} parent=11 // pred_region
        _
      $region32: #{tpu_custom_call.1} parent=11 // pred_fallthru
        _
      // Predicated region
      $region33: #{tpu_custom_call.1} parent=11 // pred_check
        %p265 = pneg %p167
      $region34: #{tpu_custom_call.1} parent=11 // pred_check_branch
        %267 = sbr.rel (%p265) target = $region36
      $region35: #{tpu_custom_call.1} parent=11 // pred_region
        _
      $region36: #{tpu_custom_call.1} parent=11 // pred_fallthru
        _
      // Predicated region
      $region37: #{tpu_custom_call.1} parent=11 // pred_check
        %p268 = pneg %p188
      $region38: #{tpu_custom_call.1} parent=11 // pred_check_branch
        %270 = sbr.rel (%p268) target = $region40
      $region39: #{tpu_custom_call.1} parent=11 // pred_region
        _
      $region40: #{tpu_custom_call.1} parent=11 // pred_fallthru
        _
      // Predicated region
      $region41: #{tpu_custom_call.1} parent=11 // pred_check
        %p271 = pneg %p209
      $region42: #{tpu_custom_call.1} parent=11 // pred_check_branch
        %273 = sbr.rel (%p271) target = $region44
      $region43: #{tpu_custom_call.1} parent=11 // pred_region
        _
      $region44: #{tpu_custom_call.1} parent=11 // pred_fallthru
        _
    $region12: #{tpu_custom_call.1} parent=5 // pred_fallthru
      _
    %p274 = scmp.lt.s32.totalorder %s15, 2
    // Predicated region
    $region45: #{tpu_custom_call.1} parent=5 // pred_check
      %p275 = pneg %p274
    $region46: #{tpu_custom_call.1} parent=5 // pred_check_branch
      %277 = sbr.rel (%p275) target = $region48
    $region47: #{tpu_custom_call.1} parent=5 // pred_region
      // Predicated region
      $region49: #{tpu_custom_call.1} parent=47 // pred_check
        %p278 = pneg %p35
      $region50: #{tpu_custom_call.1} parent=47 // pred_check_branch
        %280 = sbr.rel (%p278) target = $region52
      $region51: #{tpu_custom_call.1} parent=47 // pred_region
        %s281 = smul.u32 16, %s15
        %p282 = scmp.lt.s32.totalorder %s281, 31
        %s283 = scalar_select %p282, %s281, 31
        %s284 = smul.addr %s283, 8
        %s285 = scalar_lea.vmem %s0, %s284
        %s286 = smul.u32 16, %s15
      $region52: #{tpu_custom_call.1} parent=47 // pred_fallthru
        _
    $region48: #{tpu_custom_call.1} parent=5 // pred_fallthru
      _
    %p287 = scmp.le.s32.totalorder 1, %s15
    %p288 = scmp.lt.s32.totalorder %s15, 3
    %p289 = pnand %p287, %p288
    %p290 = pneg %p289
    // Predicated region
    $region53: #{tpu_custom_call.1} parent=5 // pred_check
      _
    $region54: #{tpu_custom_call.1} parent=5 // pred_check_branch
      %292 = sbr.rel (%p289) target = $region56
    $region55: #{tpu_custom_call.1} parent=5 // pred_region
      %s293 = ssub.s32 %s15, 1
      %s294 = smul.u32 16, %s20
      %p295 = scmp.lt.s32.totalorder %s294, 31
      %s296 = scalar_select %p295, %s294, 31
      %s297 = smul.addr %s296, 8
      %s298 = scalar_lea.vmem %s0, %s297
      %p299 = pneg %p41
      %p300 = pneg %p38
      %p301 = pneg %p62
      %p302 = pneg %p59
      %p303 = pneg %p83
      %p304 = pneg %p80
      %p305 = pneg %p104
      %p306 = pneg %p101
      %p307 = pneg %p125
      %p308 = pneg %p122
      %p309 = pneg %p146
      %p310 = pneg %p143
      %p311 = pneg %p167
      %p312 = pneg %p164
      %p313 = pneg %p188
      %p314 = pneg %p185
      %p315 = pneg %p209
      %p316 = pneg %p206
      %p317 = pneg %p235
      %p318 = pneg %p232
      %s319 = smul.u32 16, %s20
      %p320 = scmp.lt.s32.totalorder %s319, 31
      %s321 = scalar_select %p320, %s319, 31
      %s322 = smul.addr %s321, 8
      %s323 = scalar_lea.vmem %s9, %s322
      %s324 = smul.u32 16, %s20
      %p325 = scmp.lt.s32.totalorder %s324, 31
      %s326 = scalar_select %p325, %s324, 31
      %s327 = smul.addr %s326, 8
      %s328 = scalar_lea.vmem %s0, %s327
      %s329 = smul.u32 16, %s20
      %s330 = smul.u32 16, %s20
      %p331 = scmp.lt.s32.totalorder %s330, 31
      %s332 = scalar_select %p331, %s330, 31
      %s333 = smul.addr %s332, 8
      %s334 = scalar_lea.vmem %s9, %s333
      %s335 = smul.u32 16, %s20
      %v337 = vld [vmem:[%s328] sm:$0xff]
      %v338 = vld [vmem:[%s328 + $0x8] sm:$0xff]
      %v339 = vld [vmem:[%s328 + $0x10] sm:$0xff]
      %v340 = vld [vmem:[%s328 + $0x18] sm:$0xff]
      %v341 = vld [vmem:[%s328 + $0x20] sm:$0xff]
      %v342 = vld [vmem:[%s328 + $0x28] sm:$0xff]
      %v343 = vld [vmem:[%s328 + $0x30] sm:$0xff]
      %v344 = vld [vmem:[%s328 + $0x38] sm:$0xff]
      %v345 = vld [vmem:[%s328 + $0x40] sm:$0xff]
      %v346 = vld [vmem:[%s328 + $0x48] sm:$0xff]
      %v347 = vld [vmem:[%s328 + $0x50] sm:$0xff]
      %v348 = vld [vmem:[%s328 + $0x58] sm:$0xff]
      %v349 = vld [vmem:[%s328 + $0x60] sm:$0xff]
      %v350 = vld [vmem:[%s328 + $0x68] sm:$0xff]
      %v351 = vld [vmem:[%s328 + $0x70] sm:$0xff]
      %v352 = vld [vmem:[%s328 + $0x78] sm:$0xff]
      %v353 = vpack.c.bf16 %v338, %v337
      %v354 = vpack.c.bf16 %v340, %v339
      %v355 = vpack.c.bf16 %v342, %v341
      %v356 = vpack.c.bf16 %v344, %v343
      %v357 = vpack.c.bf16 %v346, %v345
      %v358 = vpack.c.bf16 %v348, %v347
      %v359 = vpack.c.bf16 %v350, %v349
      %v360 = vpack.c.bf16 %v352, %v351
      %v361 = vld [vmem:[%s1] sm:$0xf]
      %v362 = vld [vmem:[%s1 + $0x4] sm:$0xf]
      %v363 = vld [vmem:[%s1 + $0x8] sm:$0xf]
      %v364 = vld [vmem:[%s1 + $0xc] sm:$0xf]
      %v365 = vld [vmem:[%s2] sm:$0x1]
      %v367 = vlaneseq
      %v368 = vshrl.u32 %v367, 7
      %v369 = vsub.s32 0, %v368
      %v370 = vrot.slane %v365, %v369
      %v376 = vunpack.c.l.b16 %v361
      %v377 = vunpack.c.l.b16 %v362
      %v378 = vunpack.c.l.b16 %v363
      %v379 = vunpack.c.l.b16 %v364
      %v380 = vpack.c.b16 %v377, %v376
      %v381 = vpack.c.b16 %v379, %v378
      %vm384 = vcmask 261120
      %v386 = vsel %vm384, %v353, 0
      %v389 = vsel %vm384, %v354, 0
      %v392 = vsel %vm384, %v355, 0
      %v395 = vsel %vm384, %v356, 0
      %v398 = vsel %vm384, %v357, 0
      %v401 = vsel %vm384, %v358, 0
      %v404 = vsel %vm384, %v359, 0
      %v407 = vsel %vm384, %v360, 0
      %409 = vmatprep.subr.bf16.mxu0 0
      %410 = vmatpush1.bf16.msra.mxu0 %v380
      %411 = vmatprep.subr.bf16.mxu0 0
      %412 = vmatpush1.bf16.msra.mxu0 %v381
      %413 = vmatprep.subr.bf16.mxu0 0
      %414 = vmatpush1.bf16.msra.mxu0 0
      %415 = vmatprep.subr.bf16.mxu0 0
      %416 = vmatpush1.bf16.msra.mxu0 0
      %417 = vmatprep.subr.bf16.mxu0 0
      %418 = vmatpush1.bf16.msra.mxu0 0
      %419 = vmatprep.subr.bf16.mxu0 0
      %420 = vmatpush1.bf16.msra.mxu0 0
      %421 = vmatprep.subr.bf16.mxu0 0
      %422 = vmatpush1.bf16.msra.mxu0 0
      %423 = vmatprep.subr.bf16.mxu0 0
      %424 = vmatpush1.bf16.msra.mxu0 0
      %425 = vmatprep.subr.bf16.mxu0 0
      %426 = vmatpush1.bf16.msra.mxu0 0
      %427 = vmatprep.subr.bf16.mxu0 0
      %428 = vmatpush1.bf16.msra.mxu0 0
      %429 = vmatprep.subr.bf16.mxu0 0
      %430 = vmatpush1.bf16.msra.mxu0 0
      %431 = vmatprep.subr.bf16.mxu0 0
      %432 = vmatpush1.bf16.msra.mxu0 0
      %433 = vmatprep.subr.bf16.mxu0 0
      %434 = vmatpush1.bf16.msra.mxu0 0
      %435 = vmatprep.subr.bf16.mxu0 0
      %436 = vmatpush1.bf16.msra.mxu0 0
      %437 = vmatprep.subr.bf16.mxu0 0
      %438 = vmatpush1.bf16.msra.mxu0 0
      %439 = vmatprep.subr.bf16.mxu0 0
      %440 = vmatpush1.bf16.msra.mxu0 0
      %441 = vmatprep.mubr.bf16.mxu0 0
      %442 = vmatmul.mubr.bf16.gmra.mrb[0].mxu0 %v386
      %v443 = vpop.f32.mrb[0].mxu0
      %v444 = vadd.f32 %v370, %v443
      %v445 = vpop.f32.mrb[0].mxu0
      %v446 = vpop.f32.mrb[0].mxu0
      %v447 = vadd.f32 %v370, %v446
      %v448 = vpop.f32.mrb[0].mxu0
      %449 = vmatprep.mubr.bf16.mxu0 0
      %450 = vmatmul.mubr.bf16.gmra.mrb[0].mxu0 %v389
      %v451 = vpop.f32.mrb[0].mxu0
      %v452 = vadd.f32 %v370, %v451
      %v453 = vpop.f32.mrb[0].mxu0
      %v454 = vpop.f32.mrb[0].mxu0
      %v455 = vadd.f32 %v370, %v454
      %v456 = vpop.f32.mrb[0].mxu0
      %457 = vmatprep.mubr.bf16.mxu0 0
      %458 = vmatmul.mubr.bf16.gmra.mrb[0].mxu0 %v392
      %v459 = vpop.f32.mrb[0].mxu0
      %v460 = vadd.f32 %v370, %v459
      %v461 = vpop.f32.mrb[0].mxu0
      %v462 = vpop.f32.mrb[0].mxu0
      %v463 = vadd.f32 %v370, %v462
      %v464 = vpop.f32.mrb[0].mxu0
      %465 = vmatprep.mubr.bf16.mxu0 0
      %466 = vmatmul.mubr.bf16.gmra.mrb[0].mxu0 %v395
      %v467 = vpop.f32.mrb[0].mxu0
      %v468 = vadd.f32 %v370, %v467
      %v469 = vpop.f32.mrb[0].mxu0
      %v470 = vpop.f32.mrb[0].mxu0
      %v471 = vadd.f32 %v370, %v470
      %v472 = vpop.f32.mrb[0].mxu0
      %473 = vmatprep.mubr.bf16.mxu0 0
      %474 = vmatmul.mubr.bf16.gmra.mrb[0].mxu0 %v398
      %v475 = vpop.f32.mrb[0].mxu0
      %v476 = vadd.f32 %v370, %v475
      %v477 = vpop.f32.mrb[0].mxu0
      %v478 = vpop.f32.mrb[0].mxu0
      %v479 = vadd.f32 %v370, %v478
      %v480 = vpop.f32.mrb[0].mxu0
      %481 = vmatprep.mubr.bf16.mxu0 0
      %482 = vmatmul.mubr.bf16.gmra.mrb[0].mxu0 %v401
      %v483 = vpop.f32.mrb[0].mxu0
      %v484 = vadd.f32 %v370, %v483
      %v485 = vpop.f32.mrb[0].mxu0
      %v486 = vpop.f32.mrb[0].mxu0
      %v487 = vadd.f32 %v370, %v486
      %v488 = vpop.f32.mrb[0].mxu0
      %489 = vmatprep.mubr.bf16.mxu0 0
      %490 = vmatmul.mubr.bf16.gmra.mrb[0].mxu0 %v404
      %v491 = vpop.f32.mrb[0].mxu0
      %v492 = vadd.f32 %v370, %v491
      %v493 = vpop.f32.mrb[0].mxu0
      %v494 = vpop.f32.mrb[0].mxu0
      %v495 = vadd.f32 %v370, %v494
      %v496 = vpop.f32.mrb[0].mxu0
      %497 = vmatprep.mubr.bf16.mxu0 0
      %498 = vmatmul.mubr.bf16.gmra.mrb[0].mxu0 %v407
      %v499 = vpop.f32.mrb[0].mxu0
      %v500 = vadd.f32 %v370, %v499
      %v501 = vpop.f32.mrb[0].mxu0
      %v502 = vpop.f32.mrb[0].mxu0
      %v503 = vadd.f32 %v370, %v502
      %v504 = vpop.f32.mrb[0].mxu0
      %505 = vdwg.mxu0
      %v506 = vmax.f32 %v444, 0.0
      %v507 = vmax.f32 %v447, 0.0
      %v508 = vmax.f32 %v452, 0.0
      %v509 = vmax.f32 %v455, 0.0
      %v510 = vmax.f32 %v460, 0.0
      %v511 = vmax.f32 %v463, 0.0
      %v512 = vmax.f32 %v468, 0.0
      %v513 = vmax.f32 %v471, 0.0
      %v514 = vmax.f32 %v476, 0.0
      %v515 = vmax.f32 %v479, 0.0
      %v516 = vmax.f32 %v484, 0.0
      %v517 = vmax.f32 %v487, 0.0
      %v518 = vmax.f32 %v492, 0.0
      %v519 = vmax.f32 %v495, 0.0
      %v520 = vmax.f32 %v500, 0.0
      %v521 = vmax.f32 %v503, 0.0
      %v522 = vpack.c.bf16 %v507, %v506
      %v523 = vpack.c.bf16 %v509, %v508
      %v524 = vpack.c.bf16 %v511, %v510
      %v525 = vpack.c.bf16 %v513, %v512
      %v526 = vpack.c.bf16 %v515, %v514
      %v527 = vpack.c.bf16 %v517, %v516
      %v528 = vpack.c.bf16 %v519, %v518
      %v529 = vpack.c.bf16 %v521, %v520
      %v530 = vld [vmem:[%s3] sm:$0xf]
      %v531 = vld [vmem:[%s3 + $0x4] sm:$0xf]
      %v532 = vld [vmem:[%s3 + $0x8] sm:$0xf]
      %v533 = vld [vmem:[%s3 + $0xc] sm:$0xf]
      %v534 = vld [vmem:[%s3 + $0x10] sm:$0xf]
      %v535 = vld [vmem:[%s3 + $0x14] sm:$0xf]
      %v536 = vld [vmem:[%s3 + $0x18] sm:$0xf]
      %v537 = vld [vmem:[%s3 + $0x1c] sm:$0xf]
      %v538 = vld [vmem:[%s3 + $0x20] sm:$0xf]
      %v539 = vld [vmem:[%s3 + $0x24] sm:$0xf]
      %v540 = vld [vmem:[%s3 + $0x28] sm:$0xf]
      %v541 = vld [vmem:[%s3 + $0x2c] sm:$0xf]
      %v542 = vld [vmem:[%s3 + $0x30] sm:$0xf]
      %v543 = vld [vmem:[%s3 + $0x34] sm:$0xf]
      %v544 = vld [vmem:[%s3 + $0x38] sm:$0xf]
      %v545 = vld [vmem:[%s3 + $0x3c] sm:$0xf]
      %v546 = vld [vmem:[%s4] sm:$0x1]
      %v548 = vlaneseq
      %v549 = vshrl.u32 %v548, 7
      %v550 = vsub.s32 0, %v549
      %v551 = vrot.slane %v546, %v550
      %v569 = vunpack.c.l.b16 %v530
      %v570 = vunpack.c.l.b16 %v531
      %v571 = vunpack.c.l.b16 %v532
      %v572 = vunpack.c.l.b16 %v533
      %v573 = vunpack.c.l.b16 %v534
      %v574 = vunpack.c.l.b16 %v535
      %v575 = vunpack.c.l.b16 %v536
      %v576 = vunpack.c.l.b16 %v537
      %v577 = vunpack.c.l.b16 %v538
      %v578 = vunpack.c.l.b16 %v539
      %v579 = vunpack.c.l.b16 %v540
      %v580 = vunpack.c.l.b16 %v541
      %v581 = vunpack.c.l.b16 %v542
      %v582 = vunpack.c.l.b16 %v543
      %v583 = vunpack.c.l.b16 %v544
      %v584 = vunpack.c.l.b16 %v545
      %v585 = vpack.c.b16 %v570, %v569
      %v586 = vpack.c.b16 %v572, %v571
      %v587 = vpack.c.b16 %v574, %v573
      %v588 = vpack.c.b16 %v576, %v575
      %v589 = vpack.c.b16 %v578, %v577
      %v590 = vpack.c.b16 %v580, %v579
      %v591 = vpack.c.b16 %v582, %v581
      %v592 = vpack.c.b16 %v584, %v583
      %601 = vmatprep.subr.bf16.mxu0 0
      %602 = vmatpush1.bf16.msra.mxu0 %v585
      %603 = vmatprep.subr.bf16.mxu0 0
      %604 = vmatpush1.bf16.msra.mxu0 %v586
      %605 = vmatprep.subr.bf16.mxu0 0
      %606 = vmatpush1.bf16.msra.mxu0 %v587
      %607 = vmatprep.subr.bf16.mxu0 0
      %608 = vmatpush1.bf16.msra.mxu0 %v588
      %609 = vmatprep.subr.bf16.mxu0 0
      %610 = vmatpush1.bf16.msra.mxu0 %v589
      %611 = vmatprep.subr.bf16.mxu0 0
      %612 = vmatpush1.bf16.msra.mxu0 %v590
      %613 = vmatprep.subr.bf16.mxu0 0
      %614 = vmatpush1.bf16.msra.mxu0 %v591
      %615 = vmatprep.subr.bf16.mxu0 0
      %616 = vmatpush1.bf16.msra.mxu0 %v592
      %617 = vmatprep.subr.bf16.mxu0 0
      %618 = vmatpush1.bf16.msra.mxu0 0
      %619 = vmatprep.subr.bf16.mxu0 0
      %620 = vmatpush1.bf16.msra.mxu0 0
      %621 = vmatprep.subr.bf16.mxu0 0
      %622 = vmatpush1.bf16.msra.mxu0 0
      %623 = vmatprep.subr.bf16.mxu0 0
      %624 = vmatpush1.bf16.msra.mxu0 0
      %625 = vmatprep.subr.bf16.mxu0 0
      %626 = vmatpush1.bf16.msra.mxu0 0
      %627 = vmatprep.subr.bf16.mxu0 0
      %628 = vmatpush1.bf16.msra.mxu0 0
      %629 = vmatprep.subr.bf16.mxu0 0
      %630 = vmatpush1.bf16.msra.mxu0 0
      %631 = vmatprep.subr.bf16.mxu0 0
      %632 = vmatpush1.bf16.msra.mxu0 0
      %633 = vmatprep.mubr.bf16.mxu0 0
      %634 = vmatmul.mubr.bf16.gmra.mrb[0].mxu0 %v522
      %v635 = vpop.f32.mrb[0].mxu0
      %v636 = vadd.f32 %v551, %v635
      %v637 = vpop.f32.mrb[0].mxu0
      %v638 = vpop.f32.mrb[0].mxu0
      %v639 = vadd.f32 %v551, %v638
      %v640 = vpop.f32.mrb[0].mxu0
      %641 = vmatprep.mubr.bf16.mxu0 0
      %642 = vmatmul.mubr.bf16.gmra.mrb[0].mxu0 %v523
      %v643 = vpop.f32.mrb[0].mxu0
      %v644 = vadd.f32 %v551, %v643
      %v645 = vpop.f32.mrb[0].mxu0
      %v646 = vpop.f32.mrb[0].mxu0
      %v647 = vadd.f32 %v551, %v646
      %v648 = vpop.f32.mrb[0].mxu0
      %649 = vmatprep.mubr.bf16.mxu0 0
      %650 = vmatmul.mubr.bf16.gmra.mrb[0].mxu0 %v524
      %v651 = vpop.f32.mrb[0].mxu0
      %v652 = vadd.f32 %v551, %v651
      %v653 = vpop.f32.mrb[0].mxu0
      %v654 = vpop.f32.mrb[0].mxu0
      %v655 = vadd.f32 %v551, %v654
      %v656 = vpop.f32.mrb[0].mxu0
      %657 = vmatprep.mubr.bf16.mxu0 0
      %658 = vmatmul.mubr.bf16.gmra.mrb[0].mxu0 %v525
      %v659 = vpop.f32.mrb[0].mxu0
      %v660 = vadd.f32 %v551, %v659
      %v661 = vpop.f32.mrb[0].mxu0
      %v662 = vpop.f32.mrb[0].mxu0
      %v663 = vadd.f32 %v551, %v662
      %v664 = vpop.f32.mrb[0].mxu0
      %665 = vmatprep.mubr.bf16.mxu0 0
      %666 = vmatmul.mubr.bf16.gmra.mrb[0].mxu0 %v526
      %v667 = vpop.f32.mrb[0].mxu0
      %v668 = vadd.f32 %v551, %v667
      %v669 = vpop.f32.mrb[0].mxu0
      %v670 = vpop.f32.mrb[0].mxu0
      %v671 = vadd.f32 %v551, %v670
      %v672 = vpop.f32.mrb[0].mxu0
      %673 = vmatprep.mubr.bf16.mxu0 0
      %674 = vmatmul.mubr.bf16.gmra.mrb[0].mxu0 %v527
      %v675 = vpop.f32.mrb[0].mxu0
      %v676 = vadd.f32 %v551, %v675
      %v677 = vpop.f32.mrb[0].mxu0
      %v678 = vpop.f32.mrb[0].mxu0
      %v679 = vadd.f32 %v551, %v678
      %v680 = vpop.f32.mrb[0].mxu0
      %681 = vmatprep.mubr.bf16.mxu0 0
      %682 = vmatmul.mubr.bf16.gmra.mrb[0].mxu0 %v528
      %v683 = vpop.f32.mrb[0].mxu0
      %v684 = vadd.f32 %v551, %v683
      %v685 = vpop.f32.mrb[0].mxu0
      %v686 = vpop.f32.mrb[0].mxu0
      %v687 = vadd.f32 %v551, %v686
      %v688 = vpop.f32.mrb[0].mxu0
      %689 = vmatprep.mubr.bf16.mxu0 0
      %690 = vmatmul.mubr.bf16.gmra.mrb[0].mxu0 %v529
      %v691 = vpop.f32.mrb[0].mxu0
      %v692 = vadd.f32 %v551, %v691
      %v693 = vpop.f32.mrb[0].mxu0
      %v694 = vpop.f32.mrb[0].mxu0
      %v695 = vadd.f32 %v551, %v694
      %v696 = vpop.f32.mrb[0].mxu0
      %697 = vdwg.mxu0
      %v698 = vmax.f32 %v636, 0.0
      %v699 = vmax.f32 %v639, 0.0
      %v700 = vmax.f32 %v644, 0.0
      %v701 = vmax.f32 %v647, 0.0
      %v702 = vmax.f32 %v652, 0.0
      %v703 = vmax.f32 %v655, 0.0
      %v704 = vmax.f32 %v660, 0.0
      %v705 = vmax.f32 %v663, 0.0
      %v706 = vmax.f32 %v668, 0.0
      %v707 = vmax.f32 %v671, 0.0
      %v708 = vmax.f32 %v676, 0.0
      %v709 = vmax.f32 %v679, 0.0
      %v710 = vmax.f32 %v684, 0.0
      %v711 = vmax.f32 %v687, 0.0
      %v712 = vmax.f32 %v692, 0.0
      %v713 = vmax.f32 %v695, 0.0
      %v714 = vpack.c.bf16 %v699, %v698
      %v715 = vpack.c.bf16 %v701, %v700
      %v716 = vpack.c.bf16 %v703, %v702
      %v717 = vpack.c.bf16 %v705, %v704
      %v718 = vpack.c.bf16 %v707, %v706
      %v719 = vpack.c.bf16 %v709, %v708
      %v720 = vpack.c.bf16 %v711, %v710
      %v721 = vpack.c.bf16 %v713, %v712
      %v722 = vld [vmem:[%s5] sm:$0xf]
      %v723 = vld [vmem:[%s5 + $0x4] sm:$0xf]
      %v724 = vld [vmem:[%s5 + $0x8] sm:$0xf]
      %v725 = vld [vmem:[%s5 + $0xc] sm:$0xf]
      %v726 = vld [vmem:[%s5 + $0x10] sm:$0xf]
      %v727 = vld [vmem:[%s5 + $0x14] sm:$0xf]
      %v728 = vld [vmem:[%s5 + $0x18] sm:$0xf]
      %v729 = vld [vmem:[%s5 + $0x1c] sm:$0xf]
      %v730 = vld [vmem:[%s5 + $0x20] sm:$0xf]
      %v731 = vld [vmem:[%s5 + $0x24] sm:$0xf]
      %v732 = vld [vmem:[%s5 + $0x28] sm:$0xf]
      %v733 = vld [vmem:[%s5 + $0x2c] sm:$0xf]
      %v734 = vld [vmem:[%s5 + $0x30] sm:$0xf]
      %v735 = vld [vmem:[%s5 + $0x34] sm:$0xf]
      %v736 = vld [vmem:[%s5 + $0x38] sm:$0xf]
      %v737 = vld [vmem:[%s5 + $0x3c] sm:$0xf]
      %v738 = vld [vmem:[%s6] sm:$0x1]
      %v740 = vlaneseq
      %v741 = vshrl.u32 %v740, 7
      %v742 = vsub.s32 0, %v741
      %v743 = vrot.slane %v738, %v742
      %v761 = vunpack.c.l.b16 %v722
      %v762 = vunpack.c.l.b16 %v723
      %v763 = vunpack.c.l.b16 %v724
      %v764 = vunpack.c.l.b16 %v725
      %v765 = vunpack.c.l.b16 %v726
      %v766 = vunpack.c.l.b16 %v727
      %v767 = vunpack.c.l.b16 %v728
      %v768 = vunpack.c.l.b16 %v729
      %v769 = vunpack.c.l.b16 %v730
      %v770 = vunpack.c.l.b16 %v731
      %v771 = vunpack.c.l.b16 %v732
      %v772 = vunpack.c.l.b16 %v733
      %v773 = vunpack.c.l.b16 %v734
      %v774 = vunpack.c.l.b16 %v735
      %v775 = vunpack.c.l.b16 %v736
      %v776 = vunpack.c.l.b16 %v737
      %v777 = vpack.c.b16 %v762, %v761
      %v778 = vpack.c.b16 %v764, %v763
      %v779 = vpack.c.b16 %v766, %v765
      %v780 = vpack.c.b16 %v768, %v767
      %v781 = vpack.c.b16 %v770, %v769
      %v782 = vpack.c.b16 %v772, %v771
      %v783 = vpack.c.b16 %v774, %v773
      %v784 = vpack.c.b16 %v776, %v775
      %793 = vmatprep.subr.bf16.mxu0 0
      %794 = vmatpush1.bf16.msra.mxu0 %v777
      %795 = vmatprep.subr.bf16.mxu0 0
      %796 = vmatpush1.bf16.msra.mxu0 %v778
      %797 = vmatprep.subr.bf16.mxu0 0
      %798 = vmatpush1.bf16.msra.mxu0 %v779
      %799 = vmatprep.subr.bf16.mxu0 0
      %800 = vmatpush1.bf16.msra.mxu0 %v780
      %801 = vmatprep.subr.bf16.mxu0 0
      %802 = vmatpush1.bf16.msra.mxu0 %v781
      %803 = vmatprep.subr.bf16.mxu0 0
      %804 = vmatpush1.bf16.msra.mxu0 %v782
      %805 = vmatprep.subr.bf16.mxu0 0
      %806 = vmatpush1.bf16.msra.mxu0 %v783
      %807 = vmatprep.subr.bf16.mxu0 0
      %808 = vmatpush1.bf16.msra.mxu0 %v784
      %809 = vmatprep.subr.bf16.mxu0 0
      %810 = vmatpush1.bf16.msra.mxu0 0
      %811 = vmatprep.subr.bf16.mxu0 0
      %812 = vmatpush1.bf16.msra.mxu0 0
      %813 = vmatprep.subr.bf16.mxu0 0
      %814 = vmatpush1.bf16.msra.mxu0 0
      %815 = vmatprep.subr.bf16.mxu0 0
      %816 = vmatpush1.bf16.msra.mxu0 0
      %817 = vmatprep.subr.bf16.mxu0 0
      %818 = vmatpush1.bf16.msra.mxu0 0
      %819 = vmatprep.subr.bf16.mxu0 0
      %820 = vmatpush1.bf16.msra.mxu0 0
      %821 = vmatprep.subr.bf16.mxu0 0
      %822 = vmatpush1.bf16.msra.mxu0 0
      %823 = vmatprep.subr.bf16.mxu0 0
      %824 = vmatpush1.bf16.msra.mxu0 0
      %825 = vmatprep.mubr.bf16.mxu0 0
      %826 = vmatmul.mubr.bf16.gmra.mrb[0].mxu0 %v714
      %v827 = vpop.f32.mrb[0].mxu0
      %v828 = vadd.f32 %v743, %v827
      %v829 = vpop.f32.mrb[0].mxu0
      %v830 = vpop.f32.mrb[0].mxu0
      %v831 = vadd.f32 %v743, %v830
      %v832 = vpop.f32.mrb[0].mxu0
      %833 = vmatprep.mubr.bf16.mxu0 0
      %834 = vmatmul.mubr.bf16.gmra.mrb[0].mxu0 %v715
      %v835 = vpop.f32.mrb[0].mxu0
      %v836 = vadd.f32 %v743, %v835
      %v837 = vpop.f32.mrb[0].mxu0
      %v838 = vpop.f32.mrb[0].mxu0
      %v839 = vadd.f32 %v743, %v838
      %v840 = vpop.f32.mrb[0].mxu0
      %841 = vmatprep.mubr.bf16.mxu0 0
      %842 = vmatmul.mubr.bf16.gmra.mrb[0].mxu0 %v716
      %v843 = vpop.f32.mrb[0].mxu0
      %v844 = vadd.f32 %v743, %v843
      %v845 = vpop.f32.mrb[0].mxu0
      %v846 = vpop.f32.mrb[0].mxu0
      %v847 = vadd.f32 %v743, %v846
      %v848 = vpop.f32.mrb[0].mxu0
      %849 = vmatprep.mubr.bf16.mxu0 0
      %850 = vmatmul.mubr.bf16.gmra.mrb[0].mxu0 %v717
      %v851 = vpop.f32.mrb[0].mxu0
      %v852 = vadd.f32 %v743, %v851
      %v853 = vpop.f32.mrb[0].mxu0
      %v854 = vpop.f32.mrb[0].mxu0
      %v855 = vadd.f32 %v743, %v854
      %v856 = vpop.f32.mrb[0].mxu0
      %857 = vmatprep.mubr.bf16.mxu0 0
      %858 = vmatmul.mubr.bf16.gmra.mrb[0].mxu0 %v718
      %v859 = vpop.f32.mrb[0].mxu0
      %v860 = vadd.f32 %v743, %v859
      %v861 = vpop.f32.mrb[0].mxu0
      %v862 = vpop.f32.mrb[0].mxu0
      %v863 = vadd.f32 %v743, %v862
      %v864 = vpop.f32.mrb[0].mxu0
      %865 = vmatprep.mubr.bf16.mxu0 0
      %866 = vmatmul.mubr.bf16.gmra.mrb[0].mxu0 %v719
      %v867 = vpop.f32.mrb[0].mxu0
      %v868 = vadd.f32 %v743, %v867
      %v869 = vpop.f32.mrb[0].mxu0
      %v870 = vpop.f32.mrb[0].mxu0
      %v871 = vadd.f32 %v743, %v870
      %v872 = vpop.f32.mrb[0].mxu0
      %873 = vmatprep.mubr.bf16.mxu0 0
      %874 = vmatmul.mubr.bf16.gmra.mrb[0].mxu0 %v720
      %v875 = vpop.f32.mrb[0].mxu0
      %v876 = vadd.f32 %v743, %v875
      %v877 = vpop.f32.mrb[0].mxu0
      %v878 = vpop.f32.mrb[0].mxu0
      %v879 = vadd.f32 %v743, %v878
      %v880 = vpop.f32.mrb[0].mxu0
      %881 = vmatprep.mubr.bf16.mxu0 0
      %882 = vmatmul.mubr.bf16.gmra.mrb[0].mxu0 %v721
      %v883 = vpop.f32.mrb[0].mxu0
      %v884 = vadd.f32 %v743, %v883
      %v885 = vpop.f32.mrb[0].mxu0
      %v886 = vpop.f32.mrb[0].mxu0
      %v887 = vadd.f32 %v743, %v886
      %v888 = vpop.f32.mrb[0].mxu0
      %889 = vdwg.mxu0
      %v890 = vmax.f32 %v828, 0.0
      %v891 = vmax.f32 %v831, 0.0
      %v892 = vmax.f32 %v836, 0.0
      %v893 = vmax.f32 %v839, 0.0
      %v894 = vmax.f32 %v844, 0.0
      %v895 = vmax.f32 %v847, 0.0
      %v896 = vmax.f32 %v852, 0.0
      %v897 = vmax.f32 %v855, 0.0
      %v898 = vmax.f32 %v860, 0.0
      %v899 = vmax.f32 %v863, 0.0
      %v900 = vmax.f32 %v868, 0.0
      %v901 = vmax.f32 %v871, 0.0
      %v902 = vmax.f32 %v876, 0.0
      %v903 = vmax.f32 %v879, 0.0
      %v904 = vmax.f32 %v884, 0.0
      %v905 = vmax.f32 %v887, 0.0
      %v906 = vpack.c.bf16 %v891, %v890
      %v907 = vpack.c.bf16 %v893, %v892
      %v908 = vpack.c.bf16 %v895, %v894
      %v909 = vpack.c.bf16 %v897, %v896
      %v910 = vpack.c.bf16 %v899, %v898
      %v911 = vpack.c.bf16 %v901, %v900
      %v912 = vpack.c.bf16 %v903, %v902
      %v913 = vpack.c.bf16 %v905, %v904
      %v914 = vld [vmem:[%s7] sm:$0xf]
      %v915 = vld [vmem:[%s7 + $0x4] sm:$0xf]
      %v916 = vld [vmem:[%s7 + $0x8] sm:$0xf]
      %v917 = vld [vmem:[%s7 + $0xc] sm:$0xf]
      %v918 = vld [vmem:[%s7 + $0x10] sm:$0xf]
      %v919 = vld [vmem:[%s7 + $0x14] sm:$0xf]
      %v920 = vld [vmem:[%s7 + $0x18] sm:$0xf]
      %v921 = vld [vmem:[%s7 + $0x1c] sm:$0xf]
      %v922 = vld [vmem:[%s7 + $0x20] sm:$0xf]
      %v923 = vld [vmem:[%s7 + $0x24] sm:$0xf]
      %v924 = vld [vmem:[%s7 + $0x28] sm:$0xf]
      %v925 = vld [vmem:[%s7 + $0x2c] sm:$0xf]
      %v926 = vld [vmem:[%s7 + $0x30] sm:$0xf]
      %v927 = vld [vmem:[%s7 + $0x34] sm:$0xf]
      %v928 = vld [vmem:[%s7 + $0x38] sm:$0xf]
      %v929 = vld [vmem:[%s7 + $0x3c] sm:$0xf]
      %v930 = vld [vmem:[%s8] sm:$0x1]
      %v932 = vlaneseq
      %v933 = vshrl.u32 %v932, 7
      %v934 = vsub.s32 0, %v933
      %v935 = vrot.slane %v930, %v934
      %v953 = vunpack.c.l.b16 %v914
      %v954 = vunpack.c.l.b16 %v915
      %v955 = vunpack.c.l.b16 %v916
      %v956 = vunpack.c.l.b16 %v917
      %v957 = vunpack.c.l.b16 %v918
      %v958 = vunpack.c.l.b16 %v919
      %v959 = vunpack.c.l.b16 %v920
      %v960 = vunpack.c.l.b16 %v921
      %v961 = vunpack.c.l.b16 %v922
      %v962 = vunpack.c.l.b16 %v923
      %v963 = vunpack.c.l.b16 %v924
      %v964 = vunpack.c.l.b16 %v925
      %v965 = vunpack.c.l.b16 %v926
      %v966 = vunpack.c.l.b16 %v927
      %v967 = vunpack.c.l.b16 %v928
      %v968 = vunpack.c.l.b16 %v929
      %v969 = vpack.c.b16 %v954, %v953
      %v970 = vpack.c.b16 %v956, %v955
      %v971 = vpack.c.b16 %v958, %v957
      %v972 = vpack.c.b16 %v960, %v959
      %v973 = vpack.c.b16 %v962, %v961
      %v974 = vpack.c.b16 %v964, %v963
      %v975 = vpack.c.b16 %v966, %v965
      %v976 = vpack.c.b16 %v968, %v967
      %985 = vmatprep.subr.bf16.mxu0 0
      %986 = vmatpush1.bf16.msra.mxu0 %v969
      %987 = vmatprep.subr.bf16.mxu0 0
      %988 = vmatpush1.bf16.msra.mxu0 %v970
      %989 = vmatprep.subr.bf16.mxu0 0
      %990 = vmatpush1.bf16.msra.mxu0 %v971
      %991 = vmatprep.subr.bf16.mxu0 0
      %992 = vmatpush1.bf16.msra.mxu0 %v972
      %993 = vmatprep.subr.bf16.mxu0 0
      %994 = vmatpush1.bf16.msra.mxu0 %v973
      %995 = vmatprep.subr.bf16.mxu0 0
      %996 = vmatpush1.bf16.msra.mxu0 %v974
      %997 = vmatprep.subr.bf16.mxu0 0
      %998 = vmatpush1.bf16.msra.mxu0 %v975
      %999 = vmatprep.subr.bf16.mxu0 0
      %1000 = vmatpush1.bf16.msra.mxu0 %v976
      %1001 = vmatprep.subr.bf16.mxu0 0
      %1002 = vmatpush1.bf16.msra.mxu0 0
      %1003 = vmatprep.subr.bf16.mxu0 0
      %1004 = vmatpush1.bf16.msra.mxu0 0
      %1005 = vmatprep.subr.bf16.mxu0 0
      %1006 = vmatpush1.bf16.msra.mxu0 0
      %1007 = vmatprep.subr.bf16.mxu0 0
      %1008 = vmatpush1.bf16.msra.mxu0 0
      %1009 = vmatprep.subr.bf16.mxu0 0
      %1010 = vmatpush1.bf16.msra.mxu0 0
      %1011 = vmatprep.subr.bf16.mxu0 0
      %1012 = vmatpush1.bf16.msra.mxu0 0
      %1013 = vmatprep.subr.bf16.mxu0 0
      %1014 = vmatpush1.bf16.msra.mxu0 0
      %1015 = vmatprep.subr.bf16.mxu0 0
      %1016 = vmatpush1.bf16.msra.mxu0 0
      %1017 = vmatprep.mubr.bf16.mxu0 0
      %1018 = vmatmul.mubr.bf16.gmra.mrb[0].mxu0 %v906
      %v1019 = vpop.f32.mrb[0].mxu0
      %v1020 = vadd.f32 %v935, %v1019
      %v1021 = vpop.f32.mrb[0].mxu0
      %v1022 = vpop.f32.mrb[0].mxu0
      %v1023 = vadd.f32 %v935, %v1022
      %v1024 = vpop.f32.mrb[0].mxu0
      %1025 = vmatprep.mubr.bf16.mxu0 0
      %1026 = vmatmul.mubr.bf16.gmra.mrb[0].mxu0 %v907
      %v1027 = vpop.f32.mrb[0].mxu0
      %v1028 = vadd.f32 %v935, %v1027
      %v1029 = vpop.f32.mrb[0].mxu0
      %v1030 = vpop.f32.mrb[0].mxu0
      %v1031 = vadd.f32 %v935, %v1030
      %v1032 = vpop.f32.mrb[0].mxu0
      %1033 = vmatprep.mubr.bf16.mxu0 0
      %1034 = vmatmul.mubr.bf16.gmra.mrb[0].mxu0 %v908
      %v1035 = vpop.f32.mrb[0].mxu0
      %v1036 = vadd.f32 %v935, %v1035
      %v1037 = vpop.f32.mrb[0].mxu0
      %v1038 = vpop.f32.mrb[0].mxu0
      %v1039 = vadd.f32 %v935, %v1038
      %v1040 = vpop.f32.mrb[0].mxu0
      %1041 = vmatprep.mubr.bf16.mxu0 0
      %1042 = vmatmul.mubr.bf16.gmra.mrb[0].mxu0 %v909
      %v1043 = vpop.f32.mrb[0].mxu0
      %v1044 = vadd.f32 %v935, %v1043
      %v1045 = vpop.f32.mrb[0].mxu0
      %v1046 = vpop.f32.mrb[0].mxu0
      %v1047 = vadd.f32 %v935, %v1046
      %v1048 = vpop.f32.mrb[0].mxu0
      %1049 = vmatprep.mubr.bf16.mxu0 0
      %1050 = vmatmul.mubr.bf16.gmra.mrb[0].mxu0 %v910
      %v1051 = vpop.f32.mrb[0].mxu0
      %v1052 = vadd.f32 %v935, %v1051
      %v1053 = vpop.f32.mrb[0].mxu0
      %v1054 = vpop.f32.mrb[0].mxu0
      %v1055 = vadd.f32 %v935, %v1054
      %v1056 = vpop.f32.mrb[0].mxu0
      %1057 = vmatprep.mubr.bf16.mxu0 0
      %1058 = vmatmul.mubr.bf16.gmra.mrb[0].mxu0 %v911
      %v1059 = vpop.f32.mrb[0].mxu0
      %v1060 = vadd.f32 %v935, %v1059
      %v1061 = vpop.f32.mrb[0].mxu0
      %v1062 = vpop.f32.mrb[0].mxu0
      %v1063 = vadd.f32 %v935, %v1062
      %v1064 = vpop.f32.mrb[0].mxu0
      %1065 = vmatprep.mubr.bf16.mxu0 0
      %1066 = vmatmul.mubr.bf16.gmra.mrb[0].mxu0 %v912
      %v1067 = vpop.f32.mrb[0].mxu0
      %v1068 = vadd.f32 %v935, %v1067
      %v1069 = vpop.f32.mrb[0].mxu0
      %v1070 = vpop.f32.mrb[0].mxu0
      %v1071 = vadd.f32 %v935, %v1070
      %v1072 = vpop.f32.mrb[0].mxu0
      %1073 = vmatprep.mubr.bf16.mxu0 0
      %1074 = vmatmul.mubr.bf16.gmra.mrb[0].mxu0 %v913
      %v1075 = vpop.f32.mrb[0].mxu0
      %v1076 = vadd.f32 %v935, %v1075
      %v1077 = vpop.f32.mrb[0].mxu0
      %v1078 = vpop.f32.mrb[0].mxu0
      %v1079 = vadd.f32 %v935, %v1078
      %v1080 = vpop.f32.mrb[0].mxu0
      %1081 = vdwg.mxu0
      %vm1082 = vcmask 130048
      %1083 = vst.msk [vmem:[%s334] sm:$0xff] %vm1082, %v1020
      %1084 = vst.msk [vmem:[%s334 + $0x8] sm:$0xff] %vm1082, %v1023
      %1085 = vst.msk [vmem:[%s334 + $0x10] sm:$0xff] %vm1082, %v1028
      %1086 = vst.msk [vmem:[%s334 + $0x18] sm:$0xff] %vm1082, %v1031
      %1087 = vst.msk [vmem:[%s334 + $0x20] sm:$0xff] %vm1082, %v1036
      %1088 = vst.msk [vmem:[%s334 + $0x28] sm:$0xff] %vm1082, %v1039
      %1089 = vst.msk [vmem:[%s334 + $0x30] sm:$0xff] %vm1082, %v1044
      %1090 = vst.msk [vmem:[%s334 + $0x38] sm:$0xff] %vm1082, %v1047
      %1091 = vst.msk [vmem:[%s334 + $0x40] sm:$0xff] %vm1082, %v1052
      %1092 = vst.msk [vmem:[%s334 + $0x48] sm:$0xff] %vm1082, %v1055
      %1093 = vst.msk [vmem:[%s334 + $0x50] sm:$0xff] %vm1082, %v1060
      %1094 = vst.msk [vmem:[%s334 + $0x58] sm:$0xff] %vm1082, %v1063
      %1095 = vst.msk [vmem:[%s334 + $0x60] sm:$0xff] %vm1082, %v1068
      %1096 = vst.msk [vmem:[%s334 + $0x68] sm:$0xff] %vm1082, %v1071
      %1097 = vst.msk [vmem:[%s334 + $0x70] sm:$0xff] %vm1082, %v1076
      %1098 = vst.msk [vmem:[%s334 + $0x78] sm:$0xff] %vm1082, %v1079
      %s1099 = smul.u32 16, %s20
      %p1100 = scmp.lt.s32.totalorder %s1099, 31
      %s1101 = scalar_select %p1100, %s1099, 31
      %s1102 = smul.addr %s1101, 8
      %s1103 = scalar_lea.vmem %s9, %s1102
      // Predicated region
      $region57: #{tpu_custom_call.1} parent=55 // pred_check
        %p1104 = pneg %p232
      $region58: #{tpu_custom_call.1} parent=55 // pred_check_branch
        %1106 = sbr.rel (%p1104) target = $region60
      $region59: #{tpu_custom_call.1} parent=55 // pred_region
        %s1107 = smul.u32 16, %s20
      $region60: #{tpu_custom_call.1} parent=55 // pred_fallthru
        _
    $region56: #{tpu_custom_call.1} parent=5 // pred_fallthru
      _
    %p1108 = scmp.le.s32.totalorder 2, %s15
    // Predicated region
    $region61: #{tpu_custom_call.1} parent=5 // pred_check
      %p1109 = pneg %p1108
    $region62: #{tpu_custom_call.1} parent=5 // pred_check_branch
      %1111 = sbr.rel (%p1109) target = $region64
    $region63: #{tpu_custom_call.1} parent=5 // pred_region
      %s1112 = ssub.s32 %s15, 2
      // Predicated region
      $region65: #{tpu_custom_call.1} parent=63 // pred_check
        %p1113 = pneg %p238
      $region66: #{tpu_custom_call.1} parent=63 // pred_check_branch
        %1115 = sbr.rel (%p1113) target = $region68
      $region67: #{tpu_custom_call.1} parent=63 // pred_region
        %s1116 = smul.u32 16, %s21
        %p1117 = scmp.lt.s32.totalorder %s1116, 31
        %s1118 = scalar_select %p1117, %s1116, 31
        %s1119 = smul.addr %s1118, 8
        %s1120 = scalar_lea.vmem %s9, %s1119
      $region68: #{tpu_custom_call.1} parent=63 // pred_fallthru
        _
    $region64: #{tpu_custom_call.1} parent=5 // pred_fallthru
      _
  $region6: #{tpu_custom_call.1} parent=0 // loop_footer
    %s19 = sadd.s32 1, %s15
  $region7: #{tpu_custom_call.1} parent=0 // loop_footer_branch
    %14 = sbr.rel target = $region3
  $region8: #{tpu_custom_call.1} parent=0 // loop_exit
    _

</llo_original>
